<compile_context>
chip_gen: v5e
topology: v5e:2x2
jax: 0.10.0
libtpu: 0.0.40
codegen_flags: <defaults>
</compile_context>

<pallas_src>
from functools import partial

import jax
import jax.numpy as jnp
from jax.experimental import pallas as pl
from jax.experimental.pallas import tpu as pltpu

_SUBLANE = 8
_LANE = 128


def _agent_kernel(states_ref, w1_ref, b1_ref, w2_ref, b2_ref, out_ref, h_ref):
    # states_ref: SMEM (B,) int32      -- discrete state indices
    # w1_ref:     VMEM (L, H) f32      -- layer-1 weight, pre-transposed
    # b1_ref:     VMEM (1, H) f32
    # w2_ref:     VMEM (H, A_pad) f32  -- layer-2 weight, pre-transposed + lane-padded
    # b2_ref:     VMEM (1, A_pad) f32  -- lane-padded
    # out_ref:    VMEM (B, A_pad) f32
    # h_ref:      VMEM (B, H) f32 scratch (gathered W1 rows)
    B, _ = h_ref.shape
    L = w1_ref.shape[0]

    # Layer 1 "matmul" is a row select: gather W1[state] for each batch row.
    @pl.loop(0, B)
    def _(i):
        s = states_ref[i]
        # Clamp for VMEM safety; PyTorch scatter_ would raise on an OOB state.
        # TODO(synk): no in-kernel exception mechanism to mirror torch's OOB error.
        s = jnp.clip(s, 0, L - 1)
        h_ref[pl.ds(i, 1), :] = w1_ref[pl.ds(s, 1), :]

    # Layer 1 activation: VPU bias add + EUP sigmoid.
    h = jax.nn.sigmoid(h_ref[...] + b1_ref[...])                       # (B, H)

    # Layer 2: single MXU matmul with a lane-dense (128-wide) output.
    q = jnp.dot(h, w2_ref[...], preferred_element_type=jnp.float32)    # (B, A_pad)
    out_ref[...] = q + b2_ref[...]


def _agent_pallas(states, w1, b1, w2_pad, b2_pad):
    """states: (B,) int32. Returns (B, A_pad) float32 Q-values."""
    B = states.shape[0]
    _, H = w1.shape
    A_pad = w2_pad.shape[1]

    # Pad the batch up to a sublane multiple (padded rows gather row 0; discarded).
    B_pad = ((B + _SUBLANE - 1) // _SUBLANE) * _SUBLANE
    if B_pad != B:
        states = jnp.pad(states, (0, B_pad - B))

    out = pl.pallas_call(
        _agent_kernel,
        out_shape=jax.ShapeDtypeStruct((B_pad, A_pad), jnp.float32),
        in_specs=[
            pl.BlockSpec(memory_space=pltpu.SMEM),   # state indices
            pl.BlockSpec(memory_space=pltpu.VMEM),   # W1 (L, H)
            pl.BlockSpec(memory_space=pltpu.VMEM),   # b1 (1, H)
            pl.BlockSpec(memory_space=pltpu.VMEM),   # W2 (H, A_pad)
            pl.BlockSpec(memory_space=pltpu.VMEM),   # b2 (1, A_pad)
        ],
        out_specs=pl.BlockSpec(memory_space=pltpu.VMEM),
        scratch_shapes=[pltpu.VMEM((B_pad, H), jnp.float32)],
    )(states, w1, b1, w2_pad, b2_pad)
    return out[:B]


@partial(jax.jit, static_argnames="action_space_size")
def agent_forward(state, w1, b1, w2_pad, b2_pad, *, action_space_size):
    """Single-state forward, matching Agent.forward. Returns (A,) float32."""
    states = jnp.asarray(state, jnp.int32).reshape(1)
    out = _agent_pallas(states, w1, b1, w2_pad, b2_pad)
    return out[0, :action_space_size]          # equivalent of .view(-1)


@partial(jax.jit, static_argnames="action_space_size")
def agent_forward_batch(states, w1, b1, w2_pad, b2_pad, *, action_space_size):
    """Batched forward over (B,) state indices. Returns (B, A) float32."""
    states = jnp.asarray(states, jnp.int32)
    out = _agent_pallas(states, w1, b1, w2_pad, b2_pad)
    return out[:, :action_space_size]


def make_params(key, location_space_size, action_space_size, hidden_layer_size):
    """Deterministic init mirroring the PyTorch module (weights ~ U[0,1),
    biases = -0.02), stored in their final kernel-ready layout/dtype so the
    per-call wrapper does no casting or reshaping."""
    L, A, H = location_space_size, action_space_size, hidden_layer_size
    A_pad = ((A + _LANE - 1) // _LANE) * _LANE
    k1, k2 = jax.random.split(key)
    w1 = jax.random.uniform(k1, (L, H), jnp.float32)     # == l1.weight.T
    b1 = jnp.full((1, H), -0.02, jnp.float32)
    w2 = jax.random.uniform(k2, (H, A), jnp.float32)     # == l2.weight.T
    b2 = jnp.full((A,), -0.02, jnp.float32)
    w2_pad = jnp.zeros((H, A_pad), jnp.float32).at[:, :A].set(w2)
    b2_pad = jnp.zeros((1, A_pad), jnp.float32).at[0, :A].set(b2)
    return w1, b1, w2_pad, b2_pad


if __name__ == "__main__":
    location_space_size = 16   # L
    hidden_layer_size = 32     # H
    action_space_size = 4      # A

    key = jax.random.PRNGKey(0)
    w1, b1, w2_pad, b2_pad = make_params(
        key, location_space_size, action_space_size, hidden_layer_size)

    # Single-state forward (exact module semantics).
    state = jnp.int32(7)
    q = agent_forward(state, w1, b1, w2_pad, b2_pad,
                      action_space_size=action_space_size)
    q = jax.block_until_ready(q)

    # Batched forward (amortizes dispatch; layer 2 becomes a real MXU matmul).
    states = jnp.array([0, 3, 7, 15, 1, 2, 9, 11], dtype=jnp.int32)
    qb = agent_forward_batch(states, w1, b1, w2_pad, b2_pad,
                             action_space_size=action_space_size)
    qb = jax.block_until_ready(qb)

    # Plain-JAX reference of the same math.
    w2 = w2_pad[:, :action_space_size]
    b2 = b2_pad[0, :action_space_size]

    def ref(s):
        one_hot = jax.nn.one_hot(s, location_space_size, dtype=jnp.float32)
        h = jax.nn.sigmoid(one_hot @ w1 + b1[0])
        return h @ w2 + b2

    q_ref = ref(7)
    qb_ref = jax.vmap(ref)(states)

    assert q.shape == (action_space_size,)
    assert jnp.allclose(q, q_ref, atol=1e-5, rtol=1e-5)
    assert qb.shape == (states.shape[0], action_space_size)
    assert jnp.allclose(qb, qb_ref, atol=1e-5, rtol=1e-5)

    print("KERNEL_OK")
</pallas_src>

<mosaic_0001>
module attributes {stable_mosaic.version = 11 : i64} {
  func.func @_agent_kernel(%arg0: memref<8xi32, #tpu.memory_space<smem>>, %arg1: memref<16x32xf32, #tpu.memory_space<vmem>>, %arg2: memref<1x32xf32, #tpu.memory_space<vmem>>, %arg3: memref<32x128xf32, #tpu.memory_space<vmem>>, %arg4: memref<1x128xf32, #tpu.memory_space<vmem>>, %arg5: memref<8x128xf32, #tpu.memory_space<vmem>>, %arg6: memref<8x32xf32, #tpu.memory_space<vmem>>) attributes {dimension_semantics = [], scalar_prefetch = 0 : i64, scratch_operands = 1 : i64, tpu.core_type = #tpu.core_type<tc>} {
    %c0_i32 = arith.constant 0 : i32
    %c8_i32 = arith.constant 8 : i32
    %0 = arith.addi %c0_i32, %c8_i32 : i32
    %c1_i32 = arith.constant 1 : i32
    scf.for %arg7 = %c0_i32 to %0 step %c1_i32  : i32 {
      %c1_i32_11 = arith.constant 1 : i32
      %16 = arith.muli %arg7, %c1_i32_11 : i32
      %c0_i32_12 = arith.constant 0 : i32
      %17 = arith.addi %c0_i32_12, %16 : i32
      %18 = arith.index_cast %17 : i32 to index
      %19 = memref.load %arg0[%18] : memref<8xi32, #tpu.memory_space<smem>>
      %c0_i32_13 = arith.constant 0 : i32
      %c15_i32 = arith.constant 15 : i32
      %20 = arith.maxsi %c0_i32_13, %19 : i32
      %21 = arith.minsi %c15_i32, %20 : i32
      %22 = arith.index_cast %21 : i32 to index
      %c0_14 = arith.constant 0 : index
      %23 = vector.load %arg1[%22, %c0_14] : memref<16x32xf32, #tpu.memory_space<vmem>>, vector<1x32xf32>
      %24 = arith.index_cast %17 : i32 to index
      %c0_15 = arith.constant 0 : index
      %25 = vector.load %arg6[%24, %c0_15] : memref<8x32xf32, #tpu.memory_space<vmem>>, vector<1x32xf32>
      tpu.vector_store %arg6[%24, %c0_15], %23 {strides = array<i32>} : memref<8x32xf32, #tpu.memory_space<vmem>>, vector<1x32xf32>,
    }
    %c8_i32_0 = arith.constant 8 : i32
    %c0 = arith.constant 0 : index
    %c0_1 = arith.constant 0 : index
    %1 = vector.load %arg6[%c0, %c0_1] : memref<8x32xf32, #tpu.memory_space<vmem>>, vector<8x32xf32>
    %c0_2 = arith.constant 0 : index
    %c0_3 = arith.constant 0 : index
    %2 = vector.load %arg2[%c0_2, %c0_3] : memref<1x32xf32, #tpu.memory_space<vmem>>, vector<1x32xf32>
    %3 = vector.broadcast %2 : vector<1x32xf32> to vector<8x32xf32>
    %4 = arith.addf %1, %3 : vector<8x32xf32>
    %5 = arith.negf %4 : vector<8x32xf32>
    %6 = math.exp %5 : vector<8x32xf32>
    %cst = arith.constant 1.000000e+00 : f32
    %7 = vector.broadcast %cst : f32 to vector<8x32xf32>
    %8 = arith.addf %7, %6 : vector<8x32xf32>
    %9 = arith.divf %7, %8 : vector<8x32xf32>
    %c0_4 = arith.constant 0 : index
    %c0_5 = arith.constant 0 : index
    %10 = vector.load %arg3[%c0_4, %c0_5] : memref<32x128xf32, #tpu.memory_space<vmem>>, vector<32x128xf32>
    %cst_6 = arith.constant dense<0.000000e+00> : vector<8x128xf32>
    %11 = tpu.matmul %9, %10, %cst_6 {dimension_numbers = #tpu.dot_dimension_numbers<[1], [0], [0], [1], [0, 0, 1, 1], [], []>} : vector<8x32xf32>, vector<32x128xf32>, vector<8x128xf32> -> vector<8x128xf32>
    %c0_7 = arith.constant 0 : index
    %c0_8 = arith.constant 0 : index
    %12 = vector.load %arg4[%c0_7, %c0_8] : memref<1x128xf32, #tpu.memory_space<vmem>>, vector<1x128xf32>
    %13 = vector.broadcast %12 : vector<1x128xf32> to vector<8x128xf32>
    %14 = arith.addf %11, %13 : vector<8x128xf32>
    %c0_9 = arith.constant 0 : index
    %c0_10 = arith.constant 0 : index
    %15 = vector.load %arg5[%c0_9, %c0_10] : memref<8x128xf32, #tpu.memory_space<vmem>>, vector<8x128xf32>
    tpu.vector_store %arg5[%c0_9, %c0_10], %14 {strides = array<i32>} : memref<8x128xf32, #tpu.memory_space<vmem>>, vector<8x128xf32>,
    return
  }
}

</mosaic_0001>

<llo_original>
// kernel: agent_forward.1
$region0: #{agent_forward.1}
  #allocation0 [shape = 'u32[]', space=smem, size = 0x4, offset = 0x4, fixed_abs, tag = 'smem constant byte address 0x4 - core index']
  #allocation1 [shape = 'u32[72,128]{1,0:T(1,128)}', space=vmem, size = 0x9000, scoped, tag = 'internal scratch']
  #allocation2 [shape = 'f32[8,32]{1,0:T(8,128)}', space=vmem, size = 0x1000, scoped, tag = 'scratch operand']
  %s0 = inlined_call_operand.vmem [shape: s32[8], index: 0, kind: input, shape index: {}]
  %s1 = inlined_call_operand.hbm [shape: f32[16,32], index: 1, kind: input, shape index: {}]
  %s2 = inlined_call_operand.vmem [shape: f32[1,32], index: 2, kind: input, shape index: {}]
  %s3 = inlined_call_operand.hbm [shape: f32[32,128], index: 3, kind: input, shape index: {}]
  %s4 = inlined_call_operand.vmem [shape: f32[1,128], index: 4, kind: input, shape index: {}]
  %s5 = inlined_call_operand.vmem [shape: f32[8,128], index: 5, kind: output, shape index: {}]
  %s6 = sld [smem:[#allocation0]]
  $region49: #{agent_forward.1} parent=0
    _
  %s8 = ssub.s32 1, %s6
  %s9 = scalar_select 0, %s8, %s6
  $region1: #{agent_forward.1} parent=0
    #allocation3 [shape = 'u8[512]{0}', space=smem, size = 0x200, scoped, tag = 'input window, operand 0, single buffered']
    #allocation4 [shape = 's32[1]{0}', space=sflag, size = 0x4, scoped, tag = 'scoped memory for agent_forward.1']
    #allocation5 [shape = 's32[1]{0}', space=sflag, size = 0x4, scoped, tag = 'scoped memory for agent_forward.1']
    #allocation6 [shape = 'u8[8192]{0}', space=vmem, size = 0x2000, scoped, tag = 'input window, operand 1, single buffered']
    #allocation7 [shape = 'u8[16384]{0}', space=vmem, size = 0x4000, scoped, tag = 'input window, operand 3, single buffered']
    #allocation8 [shape = 's32[1]{0}', space=sflag, size = 0x4, scoped, tag = 'scoped memory for agent_forward.1']
    %10 = vsyncpa [#allocation5], 0
    %11 = vsyncpa [#allocation4], 0
    %12 = vsyncpa [#allocation8], 0
    // Predicated region
    $region2: #{agent_forward.1} parent=1 // pred_check
      _
    $region3: #{agent_forward.1} parent=1 // pred_check_branch
      %14 = sbr.rel (0) target = $region5
    $region4: #{agent_forward.1} parent=1 // pred_region
      %16 = vsyncadd [#allocation5], 0
      %s18 = sshll.u32 %s0, 4
      %s19 = int_to_ptr.vmem [resolvable:$true] %s18
      %21 = dma.vmem_to_smem %s19, 16, [#allocation3], [#allocation5]
    $region5: #{agent_forward.1} parent=1 // pred_fallthru
      _
    // Predicated region
    $region6: #{agent_forward.1} parent=1 // pred_check
      _
    $region7: #{agent_forward.1} parent=1 // pred_check_branch
      %23 = sbr.rel (0) target = $region9
    $region8: #{agent_forward.1} parent=1 // pred_region
      %25 = vsyncadd [#allocation4], 0
      %s26 = sshll.u32 %s1, 4
      %s27 = int_to_ptr.hbm [resolvable:$true] %s26
      %s28 = sshll.u32 [#allocation6], 4
      %s29 = int_to_ptr.vmem [resolvable:$true] %s28
      %34 = dma.hbm_to_vmem [thread:$0]  %s27, 256, %s29, [#allocation4], 128, 128, 8
    $region9: #{agent_forward.1} parent=1 // pred_fallthru
      _
    // Predicated region
    $region10: #{agent_forward.1} parent=1 // pred_check
      _
    $region11: #{agent_forward.1} parent=1 // pred_check_branch
      %36 = sbr.rel (0) target = $region13
    $region12: #{agent_forward.1} parent=1 // pred_region
      _
    $region13: #{agent_forward.1} parent=1 // pred_fallthru
      _
    // Predicated region
    $region14: #{agent_forward.1} parent=1 // pred_check
      _
    $region15: #{agent_forward.1} parent=1 // pred_check_branch
      %38 = sbr.rel (0) target = $region17
    $region16: #{agent_forward.1} parent=1 // pred_region
      %40 = vsyncadd [#allocation8], 0
      %s41 = sshll.u32 %s3, 4
      %s42 = int_to_ptr.hbm [resolvable:$true] %s41
      %s43 = sshll.u32 [#allocation7], 4
      %s44 = int_to_ptr.vmem [resolvable:$true] %s43
      %49 = dma.hbm_to_vmem [thread:$0]  %s42, 512, %s44, [#allocation8], 128, 128, 8
    $region17: #{agent_forward.1} parent=1 // pred_fallthru
      _
    // Predicated region
    $region18: #{agent_forward.1} parent=1 // pred_check
      _
    $region19: #{agent_forward.1} parent=1 // pred_check_branch
      %51 = sbr.rel (0) target = $region21
    $region20: #{agent_forward.1} parent=1 // pred_region
      _
    $region21: #{agent_forward.1} parent=1 // pred_fallthru
      _
    // Predicated region
    $region22: #{agent_forward.1} parent=1 // pred_check
      _
    $region23: #{agent_forward.1} parent=1 // pred_check_branch
      %53 = sbr.rel (0) target = $region25
    $region24: #{agent_forward.1} parent=1 // pred_region
      %55 = dma.done [#allocation5], 16
    $region25: #{agent_forward.1} parent=1 // pred_fallthru
      _
    // Predicated region
    $region26: #{agent_forward.1} parent=1 // pred_check
      _
    $region27: #{agent_forward.1} parent=1 // pred_check_branch
      %57 = sbr.rel (0) target = $region29
    $region28: #{agent_forward.1} parent=1 // pred_region
      %59 = dma.done [#allocation4], 256
    $region29: #{agent_forward.1} parent=1 // pred_fallthru
      _
    // Predicated region
    $region30: #{agent_forward.1} parent=1 // pred_check
      _
    $region31: #{agent_forward.1} parent=1 // pred_check_branch
      %61 = sbr.rel (0) target = $region33
    $region32: #{agent_forward.1} parent=1 // pred_region
      %63 = dma.done [#allocation8], 512
    $region33: #{agent_forward.1} parent=1 // pred_fallthru
      _
    %64 = sfence
    loop: start=0, step=1, limit=8
    $region34: #{agent_forward.1} parent=1 // loop_pre_header
      _
    $region35: #{agent_forward.1} parent=1 // loop_header
      %s66 = sphi 0, %s70
      %p67 = scmp.ge.s32.totalorder %s66, 8
    $region36: #{agent_forward.1} parent=1 // loop_header_branch
      %69 = sbr.rel (%p67) target = $region40
    $region37: #{agent_forward.1} parent=1 // loop_body
      %s71 = sld [smem:[#allocation3 + %s66]]
      %p72 = scmp.gt.s32.totalorder %s71, 0
      %s73 = scalar_select %p72, %s71, 0
      %p74 = scmp.lt.s32.totalorder %s73, 15
      %s75 = scalar_select %p74, %s73, 15
      %s76 = scalar_lea.vmem [#allocation6], %s75
      %v77 = vld [vmem:[%s76] sm:$0x1]
      %s78 = scalar_lea.vmem [#allocation2], %s66
      %vm79 = vcmask 253952
      %80 = vst.msk [vmem:[%s78] sm:$0x1] %vm79, %v77
    $region38: #{agent_forward.1} parent=1 // loop_footer
      %s70 = sadd.s32 1, %s66
    $region39: #{agent_forward.1} parent=1 // loop_footer_branch
      %65 = sbr.rel target = $region35
    $region40: #{agent_forward.1} parent=1 // loop_exit
      _
    %v81 = vld [vmem:[#allocation2] sm:$0xff]
    %v82 = vld [vmem:[%s2] sm:$0x1]
    %v84 = vperm.slane %v82, 0
    %v86 = vadd.f32 %v81, %v84
    %v87 = vxor.u32 %v86, 2147483648
    %v88 = vmul.f32 %v87, 1.442695
    %v89 = vpow.pop %v88
    %v90 = vadd.f32 %v89, 1.0
    %v91 = vrcp.pop %v90
    %v92 = vmul.f32 %v90, %v91
    %v93 = vsub.f32 1.0, %v92
    %v94 = vmul.f32 %v91, %v93
    %v95 = vadd.f32 %v91, %v94
    %vm96 = vweird.f32 %v90
    %vm97 = vweird.f32 %v91
    %vm98 = vmor %vm96, %vm97
    %v99 = vsel %vm98, %v91, %v95
    %v100 = vand.u32 2147483647, %v90
    %vm101 = vcmp.eq.f32.partialorder %v100, 8.507059e+37
    %v102 = vand.u32 %v90, 2147483648
    %v103 = vor.u32 1.1754944e-38, %v102
    %v104 = vsel %vm101, %v103, %v99
    %v105 = vmul.f32 1.0, %v104
    %v106 = vld [vmem:[#allocation7] sm:$0xff]
    %v107 = vld [vmem:[#allocation7 + $0x8] sm:$0xff]
    %v108 = vld [vmem:[#allocation7 + $0x10] sm:$0xff]
    %v109 = vld [vmem:[#allocation7 + $0x18] sm:$0xff]
    %v110 = vld [vmem:[%s4] sm:$0x1]
    %v112 = vperm.slane %v110, 0
    %vm114 = vcmask 261120
    %v116 = vsel %vm114, %v105, 0
    %118 = vmatpush.msra.mxu0 0.0
    %119 = vmatpush.msra.mxu0 0.0
    %120 = vmatpush.msra.mxu0 0.0
    %121 = vmatpush.msra.mxu0 0.0
    %122 = vmatpush.msra.mxu0 0.0
    %123 = vmatpush.msra.mxu0 0.0
    %124 = vmatpush.msra.mxu0 0.0
    %125 = vmatpush.msra.mxu0 0.0
    %126 = vmatpush.msra.mxu0 0.0
    %127 = vmatpush.msra.mxu0 0.0
    %128 = vmatpush.msra.mxu0 0.0
    %129 = vmatpush.msra.mxu0 0.0
    %130 = vmatpush.msra.mxu0 %v109
    %131 = vmatpush.msra.mxu0 %v108
    %132 = vmatpush.msra.mxu0 %v107
    %133 = vmatpush.msra.mxu0 %v106
    %134 = vmatmul.f32.gmra.mxu0 %v116
    %v135 = vpop.f32.mrf.mxu0
    %v136 = vadd.f32 %v112, %v135
    %137 = vdwg.mxu0
    %138 = vst [vmem:[%s5] sm:$0xff] %v136
    // Predicated region
    $region41: #{agent_forward.1} parent=1 // pred_check
      _
    $region42: #{agent_forward.1} parent=1 // pred_check_branch
      %140 = sbr.rel (0) target = $region44
    $region43: #{agent_forward.1} parent=1 // pred_region
      _
    $region44: #{agent_forward.1} parent=1 // pred_fallthru
      _
    // Predicated region
    $region45: #{agent_forward.1} parent=1 // pred_check
      _
    $region46: #{agent_forward.1} parent=1 // pred_check_branch
      %142 = sbr.rel (0) target = $region48
    $region47: #{agent_forward.1} parent=1 // pred_region
      _
    $region48: #{agent_forward.1} parent=1 // pred_fallthru
      _
    %143 = vsyncpa [#allocation4], 1
    %144 = vsyncpa [#allocation8], 1
    %145 = vsyncpa [#allocation5], 1

</llo_original>
